<compile_context>
chip_gen: v5e
topology: v5e:2x2
jax: 0.10.0
libtpu: 0.0.40
codegen_flags: <defaults>
</compile_context>

<pallas_src>
import math
import functools

import numpy as np
import jax
import jax.numpy as jnp
from jax.experimental import pallas as pl
from jax.experimental.pallas import tpu as pltpu


# ----------------------------------------------------------------------------
# One-time (import-time) capability probe: can grid-invariant inputs be
# single-buffered via pipeline_mode=pl.Buffered(1)?  Kept out of the hot path.
# ----------------------------------------------------------------------------
def _probe_single_buffer():
    if not hasattr(pl, "Buffered"):
        return False
    try:
        def _copy(a_ref, o_ref):
            o_ref[...] = a_ref[...]

        a = jnp.zeros((8, 128), jnp.float32)
        out = pl.pallas_call(
            _copy,
            out_shape=jax.ShapeDtypeStruct((16, 128), jnp.float32),
            grid=(2,),
            in_specs=[pl.BlockSpec((8, 128), lambda i: (0, 0),
                                   pipeline_mode=pl.Buffered(1))],
            out_specs=pl.BlockSpec((8, 128), lambda i: (i, 0)),
        )(a)
        jax.block_until_ready(out)
        return True
    except Exception:
        return False


_SINGLE_BUFFER_OK = _probe_single_buffer()


# ----------------------------------------------------------------------------
# Kernel
# ----------------------------------------------------------------------------
def _triplet_attention_kernel(x_ref, w_qkvt_ref, b_qkvt_ref, w_o_ref, b_o_ref,
                              ltri_ref, nmask_ref, o_ref,
                              *, num_heads, batch_block, compute_dtype):
    cdt = compute_dtype
    H = num_heads
    nb = batch_block
    _, T, D = x_ref.shape
    hd = D // H
    scale = 1.0 / math.sqrt(hd)
    inv_sqrt_hd = 1.0 / math.sqrt(hd)

    # Fused q/k/v/t projection for the whole batch block:
    # one (nb*T, D) x (D, 4D) MXU matmul, f32 accumulation, f32 bias add.
    xc = x_ref[...].reshape(nb * T, D).astype(cdt)
    proj = (jnp.dot(xc, w_qkvt_ref[...], preferred_element_type=jnp.float32)
            + b_qkvt_ref[0])                                    # (nb*T, 4D) f32

    ltri = ltri_ref[...]                                        # (T, T) 0/1, cdt
    nmask = nmask_ref[...]                                      # (T, T) {0,-inf} f32

    ctx_slabs = []
    for b in range(nb):                                         # nb is small (<= 4)
        p = proj[b * T:(b + 1) * T]                             # (T, 4D) static slice
        q = p[:, 0 * D:1 * D]
        k = p[:, 1 * D:2 * D]
        v = p[:, 2 * D:3 * D]
        t = p[:, 3 * D:4 * D]

        # Causal cumsum over time for ALL heads at once: (T,T) x (T,D) matmul.
        # TODO(synk): for long sequences keep this one matmul with f32 operands;
        # bf16 relative error grows with T.
        kv = (k * v * inv_sqrt_hd).astype(cdt)
        cum = jnp.dot(ltri, kv, preferred_element_type=jnp.float32)   # (T, D) f32

        qc, kc, vc = q.astype(cdt), k.astype(cdt), v.astype(cdt)
        qtc = (q * t).astype(cdt)
        cumc = cum.astype(cdt)

        # Head-major slabs with the two score matmuls fused along the contraction
        # axis: [q_h | (q*t)_h] and [k_h | cum_h] -> contraction depth 2*hd.
        # (the relayout is paid once per batch element; no per-head masked stores)
        q_sides, k_sides, v_heads = [], [], []
        for h in range(H):
            sl = slice(h * hd, (h + 1) * hd)
            q_sides.append(jnp.concatenate([qc[:, sl], qtc[:, sl]], axis=1))
            k_sides.append(jnp.concatenate([kc[:, sl], cumc[:, sl]], axis=1))
            v_heads.append(vc[:, sl])
        qcat = jnp.stack(q_sides, axis=0)                       # (H, T, 2*hd)
        kcat = jnp.stack(k_sides, axis=0)                       # (H, T, 2*hd)
        vcat = jnp.stack(v_heads, axis=0)                       # (H, T, hd)

        # All heads in one batched MXU pass; softmax vectorized over (H, T, T).
        scores = jnp.einsum('htd,hsd->hts', qcat, kcat,
                            preferred_element_type=jnp.float32)
        scores = scores * scale + nmask[None, :, :]             # causal -inf mask
        scores = scores - jnp.max(scores, axis=-1, keepdims=True)
        e = jnp.exp(scores)
        attn = e * pl.reciprocal(jnp.sum(e, axis=-1, keepdims=True), approx=True)
        # dropout: identity in eval mode

        out_h = jnp.einsum('hts,hsd->htd', attn.astype(cdt), vcat,
                           preferred_element_type=jnp.float32)  # (H, T, hd)
        ctx_slabs.append(jnp.concatenate([out_h[h] for h in range(H)], axis=1))

    ctx = ctx_slabs[0] if nb == 1 else jnp.concatenate(ctx_slabs, axis=0)  # (nb*T, D)

    # Output projection over the whole batch block + single full-width store.
    y = (jnp.dot(ctx.astype(cdt), w_o_ref[...], preferred_element_type=jnp.float32)
         + b_o_ref[0])
    o_ref[...] = y.reshape(nb, T, D).astype(o_ref.dtype)


# ----------------------------------------------------------------------------
# Wrapper
# ----------------------------------------------------------------------------
def _pick_batch_block(batch):
    # Keep >= 2 parallel grid steps when possible (v7x dual-TC), while blocking
    # the batch dim to amortize per-grid-step overhead (v5e/v6e) when B allows.
    for nb in (4, 2):
        if batch % nb == 0 and batch // nb >= 2:
            return nb
    return 1


@functools.partial(jax.jit,
                   static_argnames=("num_heads", "compute_dtype", "batch_block"))
def triplet_attention(x, params, num_heads, compute_dtype=jnp.bfloat16,
                      batch_block=None):
    B, T, D = x.shape
    H = num_heads
    assert D % H == 0, "d_model must be divisible by num_heads"
    (wq, bq, wk, bk, wv, bv, wt, bt, wo, bo) = params
    cdt = compute_dtype
    wbytes = jnp.dtype(cdt).itemsize
    xbytes = jnp.dtype(x.dtype).itemsize

    nb = _pick_batch_block(B) if batch_block is None else batch_block
    if B % nb != 0:
        raise ValueError(f"batch_block={nb} must divide batch={B}")

    # glue: torch Linear weights are (out, in) -> transpose to (in, out), pack
    # q/k/v/t into one (D, 4D) slab and cast to the MXU compute dtype; biases
    # stay f32 (added after f32 accumulation) packed to (1, 4D) / (1, D).
    w_qkvt = jnp.concatenate([wq.T, wk.T, wv.T, wt.T], axis=1).astype(cdt)
    b_qkvt = jnp.concatenate([bq, bk, bv, bt]).reshape(1, 4 * D).astype(jnp.float32)
    w_o = wo.T.astype(cdt)
    b_o = bo.reshape(1, D).astype(jnp.float32)

    # Grid-invariant causal helpers (trace-time constants): 0/1 lower triangle
    # for the cumsum matmul and an additive {0, -inf} mask for the scores.
    tri = np.tril(np.ones((T, T), dtype=np.float32))
    ltri = jnp.asarray(tri, dtype=cdt)
    nmask = jnp.asarray(np.where(tri > 0, 0.0, -np.inf), dtype=jnp.float32)

    args = (x, w_qkvt, b_qkvt, w_o, b_o, ltri, nmask)

    kernel = functools.partial(_triplet_attention_kernel, num_heads=H,
                               batch_block=nb, compute_dtype=cdt)

    # --- VMEM budget (generation aware) --------------------------------------
    weight_buf = 1 if _SINGLE_BUFFER_OK else 2            # double-buffered fallback
    weights_bytes = weight_buf * (5 * D * D * wbytes + 5 * D * 4)
    io_bytes = 2 * 2 * nb * T * D * xbytes                 # x + out, double-buffered
    act_bytes = (nb * T * 4 * D * 4                        # fused projection (f32)
                 + 8 * T * D * 4                           # q/k/v/t/cum/qt/ctx temps
                 + 4 * T * 2 * D * wbytes)                 # fused head slabs
    score_bytes = 4 * H * T * T * 4                        # scores / exp / attn
    mask_bytes = 2 * T * T * (wbytes + 4)
    budget = int(1.5 * (weights_bytes + io_bytes + act_bytes
                        + score_bytes + mask_bytes))
    try:
        vmem_cap = int(getattr(pltpu.get_tpu_info(), "vmem_capacity_bytes",
                               64 * 1024 * 1024))
    except Exception:
        vmem_cap = 64 * 1024 * 1024                        # conservative (v7x-sized)
    hard_cap = (vmem_cap * 3) // 4                         # ~48 MiB v7x, ~96 MiB v5e/v6e
    vmem_limit = min(max(budget, 32 * 1024 * 1024), hard_cap)

    cost = pl.CostEstimate(
        flops=int(B * (10 * T * D * D + 8 * T * T * D)),
        transcendentals=int(B * H * T * T),
        bytes_accessed=int(5 * D * D * wbytes + 5 * D * 4
                           + 2 * B * T * D * xbytes + 2 * T * T * 4),
    )

    if _SINGLE_BUFFER_OK:
        def const_spec(shape):
            return pl.BlockSpec(shape, lambda i: (0,) * len(shape),
                                pipeline_mode=pl.Buffered(1))
    else:
        def const_spec(shape):
            return pl.BlockSpec(shape, lambda i: (0,) * len(shape))

    in_specs = [
        pl.BlockSpec((nb, T, D), lambda i: (i, 0, 0)),     # x (batch block)
        const_spec((D, 4 * D)),                            # packed q/k/v/t weights
        const_spec((1, 4 * D)),                            # packed q/k/v/t biases
        const_spec((D, D)),                                # out-proj weight
        const_spec((1, D)),                                # out-proj bias
        const_spec((T, T)),                                # ltri (cumsum matmul)
        const_spec((T, T)),                                # additive causal mask
    ]

    return pl.pallas_call(
        kernel,
        out_shape=jax.ShapeDtypeStruct((B, T, D), x.dtype),
        grid_spec=pltpu.PrefetchScalarGridSpec(
            num_scalar_prefetch=0,
            grid=(B // nb,),
            in_specs=in_specs,
            out_specs=pl.BlockSpec((nb, T, D), lambda i: (i, 0, 0)),
        ),
        compiler_params=pltpu.CompilerParams(
            dimension_semantics=("parallel",),
            vmem_limit_bytes=vmem_limit,
        ),
        cost_estimate=cost,
    )(*args)


# ----------------------------------------------------------------------------
# Pure-JAX reference (mirrors the PyTorch forward in eval mode, f32)
# ----------------------------------------------------------------------------
def triplet_attention_ref(x, params, num_heads):
    (wq, bq, wk, bk, wv, bv, wt, bt, wo, bo) = params
    B, T, D = x.shape
    H = num_heads
    hd = D // H
    scale = 1.0 / math.sqrt(hd)

    def lin(w, b):
        return x @ w.T + b

    def split_heads(y):
        return jnp.transpose(y.reshape(B, T, H, hd), (0, 2, 1, 3))  # (B,H,T,hd)

    q = split_heads(lin(wq, bq))
    k = split_heads(lin(wk, bk))
    v = split_heads(lin(wv, bv))
    t = split_heads(lin(wt, bt))

    scores_dot = jnp.einsum('bhqd,bhkd->bhqk', q, k)
    kv = k * v / math.sqrt(hd)
    cum = jnp.cumsum(kv, axis=2)
    scores_tri = jnp.einsum('bhqd,bhkd->bhqk', q * t, cum)
    scores = (scores_dot + scores_tri) * scale

    mask = jnp.triu(jnp.ones((T, T), dtype=bool), k=1)
    scores = jnp.where(mask[None, None], -jnp.inf, scores)
    scores = scores - jnp.max(scores, axis=-1, keepdims=True)
    attn = jax.nn.softmax(scores, axis=-1)
    out = jnp.einsum('bhqk,bhkd->bhqd', attn, v)
    out = jnp.transpose(out, (0, 2, 1, 3)).reshape(B, T, D)
    return out @ wo.T + bo


def make_params(key, d_model):
    ks = jax.random.split(key, 10)

    def w(k):
        return jax.random.normal(k, (d_model, d_model), jnp.float32) * 0.1

    def b(k):
        return jax.random.normal(k, (d_model,), jnp.float32) * 0.1

    return (w(ks[0]), b(ks[1]),   # q
            w(ks[2]), b(ks[3]),   # k
            w(ks[4]), b(ks[5]),   # v
            w(ks[6]), b(ks[7]),   # t
            w(ks[8]), b(ks[9]))   # out


if __name__ == "__main__":
    B, T, D, H = 2, 8, 32, 4
    key = jax.random.PRNGKey(0)
    kx, kp = jax.random.split(key)
    x = jax.random.normal(kx, (B, T, D), jnp.float32)
    params = make_params(kp, D)

    ref = triplet_attention_ref(x, params, num_heads=H)

    # f32 MXU path: tight structural check against the pure-JAX reference.
    out_f32 = jax.block_until_ready(
        triplet_attention(x, params, num_heads=H, compute_dtype=jnp.float32))
    assert out_f32.shape == (B, T, D)
    err32 = jnp.max(jnp.abs(out_f32 - ref))
    assert jnp.allclose(out_f32, ref, rtol=1e-2, atol=1e-2), (
        f"f32 path max abs diff {err32}")

    # Default bf16-operand / f32-accumulation path (looser tolerance).
    out = jax.block_until_ready(triplet_attention(x, params, num_heads=H))
    assert out.shape == (B, T, D)
    err = jnp.max(jnp.abs(out - ref))
    assert jnp.allclose(out, ref, rtol=5e-2, atol=5e-2), (
        f"bf16 path max abs diff {err}")

    print("KERNEL_OK")
</pallas_src>

<mosaic_0001>
module attributes {stable_mosaic.version = 11 : i64} {
  func.func @_copy(%arg0: i32, %arg1: memref<8x128xf32, #tpu.memory_space<vmem>>, %arg2: memref<8x128xf32, #tpu.memory_space<vmem>>) attributes {dimension_semantics = [#tpu.dimension_semantics<arbitrary>], iteration_bounds = array<i64: 2>, scalar_prefetch = 0 : i64, scratch_operands = 0 : i64, tpu.core_type = #tpu.core_type<tc>, window_params = [{pipeline_mode = #tpu.pipeline_mode<synchronous>, transform_indices = @transform_0, window_bounds = array<i64: 8, 128>}, {transform_indices = @transform_1, window_bounds = array<i64: 8, 128>}]} {
    %c0 = arith.constant 0 : index
    %c0_0 = arith.constant 0 : index
    %0 = vector.load %arg1[%c0, %c0_0] : memref<8x128xf32, #tpu.memory_space<vmem>>, vector<8x128xf32>
    %c0_1 = arith.constant 0 : index
    %c0_2 = arith.constant 0 : index
    %1 = vector.load %arg2[%c0_1, %c0_2] : memref<8x128xf32, #tpu.memory_space<vmem>>, vector<8x128xf32>
    tpu.vector_store %arg2[%c0_1, %c0_2], %0 {strides = array<i32>} : memref<8x128xf32, #tpu.memory_space<vmem>>, vector<8x128xf32>,
    return
  }
  func.func @transform_0(%arg0: i32) -> (i32, i32) {
    %c0_i32 = arith.constant 0 : i32
    %c0_i32_0 = arith.constant 0 : i32
    %c0_i32_1 = arith.constant 0 : i32
    return %c0_i32, %c0_i32_0 : i32, i32
  }
  func.func @transform_1(%arg0: i32) -> (i32, i32) {
    %c0_i32 = arith.constant 0 : i32
    %c0_i32_0 = arith.constant 0 : i32
    return %arg0, %c0_i32 : i32, i32
  }
}

module attributes {stable_mosaic.version = 11 : i64} {
  func.func @_triplet_attention_kernel(%arg0: i32, %arg1: memref<1x8x32xf32, #tpu.memory_space<vmem>>, %arg2: memref<32x128xf32, #tpu.memory_space<vmem>>, %arg3: memref<1x128xf32, #tpu.memory_space<vmem>>, %arg4: memref<32x32xf32, #tpu.memory_space<vmem>>, %arg5: memref<1x32xf32, #tpu.memory_space<vmem>>, %arg6: memref<8x8xf32, #tpu.memory_space<vmem>>, %arg7: memref<8x8xf32, #tpu.memory_space<vmem>>, %arg8: memref<1x8x32xf32, #tpu.memory_space<vmem>>) attributes {dimension_semantics = [#tpu.dimension_semantics<parallel>], iteration_bounds = array<i64: 2>, scalar_prefetch = 0 : i64, scratch_operands = 0 : i64, tpu.core_type = #tpu.core_type<tc>, window_params = [{transform_indices = @transform_0, window_bounds = array<i64: 1, 8, 32>}, {pipeline_mode = #tpu.pipeline_mode<synchronous>, transform_indices = @transform_1, window_bounds = array<i64: 32, 128>}, {pipeline_mode = #tpu.pipeline_mode<synchronous>, transform_indices = @transform_2, window_bounds = array<i64: 1, 128>}, {pipeline_mode = #tpu.pipeline_mode<synchronous>, transform_indices = @transform_3, window_bounds = array<i64: 32, 32>}, {pipeline_mode = #tpu.pipeline_mode<synchronous>, transform_indices = @transform_4, window_bounds = array<i64: 1, 32>}, {pipeline_mode = #tpu.pipeline_mode<synchronous>, transform_indices = @transform_5, window_bounds = array<i64: 8, 8>}, {pipeline_mode = #tpu.pipeline_mode<synchronous>, transform_indices = @transform_6, window_bounds = array<i64: 8, 8>}, {transform_indices = @transform_7, window_bounds = array<i64: 1, 8, 32>}]} {
    %c0 = arith.constant 0 : index
    %c0_0 = arith.constant 0 : index
    %c0_1 = arith.constant 0 : index
    %0 = vector.load %arg1[%c0, %c0_0, %c0_1] : memref<1x8x32xf32, #tpu.memory_space<vmem>>, vector<1x8x32xf32>
    %1 = vector.shape_cast %0 : vector<1x8x32xf32> to vector<8x32xf32>
    %c0_2 = arith.constant 0 : index
    %c0_3 = arith.constant 0 : index
    %2 = vector.load %arg2[%c0_2, %c0_3] : memref<32x128xf32, #tpu.memory_space<vmem>>, vector<32x128xf32>
    %cst = arith.constant dense<0.000000e+00> : vector<8x128xf32>
    %3 = tpu.matmul %1, %2, %cst {dimension_numbers = #tpu.dot_dimension_numbers<[1], [0], [0], [1], [0, 0, 1, 1], [], []>} : vector<8x32xf32>, vector<32x128xf32>, vector<8x128xf32> -> vector<8x128xf32>
    %c0_4 = arith.constant 0 : index
    %c0_5 = arith.constant 0 : index
    %4 = vector.load %arg3[%c0_4, %c0_5] : memref<1x128xf32, #tpu.memory_space<vmem>>, vector<1x128xf32>
    %5 = vector.shape_cast %4 : vector<1x128xf32> to vector<128xf32>
    %6 = vector.shape_cast %5 : vector<128xf32> to vector<1x128xf32>
    %7 = vector.broadcast %6 : vector<1x128xf32> to vector<8x128xf32>
    %8 = arith.addf %3, %7 : vector<8x128xf32>
    %c0_6 = arith.constant 0 : index
    %c0_7 = arith.constant 0 : index
    %9 = vector.load %arg6[%c0_6, %c0_7] : memref<8x8xf32, #tpu.memory_space<vmem>>, vector<8x8xf32>
    %c0_8 = arith.constant 0 : index
    %c0_9 = arith.constant 0 : index
    %10 = vector.load %arg7[%c0_8, %c0_9] : memref<8x8xf32, #tpu.memory_space<vmem>>, vector<8x8xf32>
    %11 = vector.extract_strided_slice %8 {offsets = [0, 0], sizes = [8, 32], strides = [1, 1]} : vector<8x128xf32> to vector<8x32xf32>
    %12 = vector.extract_strided_slice %8 {offsets = [0, 32], sizes = [8, 32], strides = [1, 1]} : vector<8x128xf32> to vector<8x32xf32>
    %13 = vector.extract_strided_slice %8 {offsets = [0, 64], sizes = [8, 32], strides = [1, 1]} : vector<8x128xf32> to vector<8x32xf32>
    %14 = vector.extract_strided_slice %8 {offsets = [0, 96], sizes = [8, 32], strides = [1, 1]} : vector<8x128xf32> to vector<8x32xf32>
    %15 = arith.mulf %12, %13 : vector<8x32xf32>
    %cst_10 = arith.constant 0.353553385 : f32
    %16 = vector.broadcast %cst_10 : f32 to vector<8x32xf32>
    %17 = arith.mulf %15, %16 : vector<8x32xf32>
    %cst_11 = arith.constant dense<0.000000e+00> : vector<8x32xf32>
    %18 = tpu.matmul %9, %17, %cst_11 {dimension_numbers = #tpu.dot_dimension_numbers<[1], [0], [0], [1], [0, 0, 1, 1], [], []>} : vector<8x8xf32>, vector<8x32xf32>, vector<8x32xf32> -> vector<8x32xf32>
    %19 = arith.mulf %11, %14 : vector<8x32xf32>
    %20 = vector.extract_strided_slice %11 {offsets = [0, 0], sizes = [8, 8], strides = [1, 1]} : vector<8x32xf32> to vector<8x8xf32>
    %21 = vector.extract_strided_slice %19 {offsets = [0, 0], sizes = [8, 8], strides = [1, 1]} : vector<8x32xf32> to vector<8x8xf32>
    %22 = tpu.concatenate %20, %21 in 1 : vector<8x8xf32>, vector<8x8xf32> -> vector<8x16xf32>
    %23 = vector.extract_strided_slice %12 {offsets = [0, 0], sizes = [8, 8], strides = [1, 1]} : vector<8x32xf32> to vector<8x8xf32>
    %24 = vector.extract_strided_slice %18 {offsets = [0, 0], sizes = [8, 8], strides = [1, 1]} : vector<8x32xf32> to vector<8x8xf32>
    %25 = tpu.concatenate %23, %24 in 1 : vector<8x8xf32>, vector<8x8xf32> -> vector<8x16xf32>
    %26 = vector.extract_strided_slice %13 {offsets = [0, 0], sizes = [8, 8], strides = [1, 1]} : vector<8x32xf32> to vector<8x8xf32>
    %27 = vector.extract_strided_slice %11 {offsets = [0, 8], sizes = [8, 8], strides = [1, 1]} : vector<8x32xf32> to vector<8x8xf32>
    %28 = vector.extract_strided_slice %19 {offsets = [0, 8], sizes = [8, 8], strides = [1, 1]} : vector<8x32xf32> to vector<8x8xf32>
    %29 = tpu.concatenate %27, %28 in 1 : vector<8x8xf32>, vector<8x8xf32> -> vector<8x16xf32>
    %30 = vector.extract_strided_slice %12 {offsets = [0, 8], sizes = [8, 8], strides = [1, 1]} : vector<8x32xf32> to vector<8x8xf32>
    %31 = vector.extract_strided_slice %18 {offsets = [0, 8], sizes = [8, 8], strides = [1, 1]} : vector<8x32xf32> to vector<8x8xf32>
    %32 = tpu.concatenate %30, %31 in 1 : vector<8x8xf32>, vector<8x8xf32> -> vector<8x16xf32>
    %33 = vector.extract_strided_slice %13 {offsets = [0, 8], sizes = [8, 8], strides = [1, 1]} : vector<8x32xf32> to vector<8x8xf32>
    %34 = vector.extract_strided_slice %11 {offsets = [0, 16], sizes = [8, 8], strides = [1, 1]} : vector<8x32xf32> to vector<8x8xf32>
    %35 = vector.extract_strided_slice %19 {offsets = [0, 16], sizes = [8, 8], strides = [1, 1]} : vector<8x32xf32> to vector<8x8xf32>
    %36 = tpu.concatenate %34, %35 in 1 : vector<8x8xf32>, vector<8x8xf32> -> vector<8x16xf32>
    %37 = vector.extract_strided_slice %12 {offsets = [0, 16], sizes = [8, 8], strides = [1, 1]} : vector<8x32xf32> to vector<8x8xf32>
    %38 = vector.extract_strided_slice %18 {offsets = [0, 16], sizes = [8, 8], strides = [1, 1]} : vector<8x32xf32> to vector<8x8xf32>
    %39 = tpu.concatenate %37, %38 in 1 : vector<8x8xf32>, vector<8x8xf32> -> vector<8x16xf32>
    %40 = vector.extract_strided_slice %13 {offsets = [0, 16], sizes = [8, 8], strides = [1, 1]} : vector<8x32xf32> to vector<8x8xf32>
    %41 = vector.extract_strided_slice %11 {offsets = [0, 24], sizes = [8, 8], strides = [1, 1]} : vector<8x32xf32> to vector<8x8xf32>
    %42 = vector.extract_strided_slice %19 {offsets = [0, 24], sizes = [8, 8], strides = [1, 1]} : vector<8x32xf32> to vector<8x8xf32>
    %43 = tpu.concatenate %41, %42 in 1 : vector<8x8xf32>, vector<8x8xf32> -> vector<8x16xf32>
    %44 = vector.extract_strided_slice %12 {offsets = [0, 24], sizes = [8, 8], strides = [1, 1]} : vector<8x32xf32> to vector<8x8xf32>
    %45 = vector.extract_strided_slice %18 {offsets = [0, 24], sizes = [8, 8], strides = [1, 1]} : vector<8x32xf32> to vector<8x8xf32>
    %46 = tpu.concatenate %44, %45 in 1 : vector<8x8xf32>, vector<8x8xf32> -> vector<8x16xf32>
    %47 = vector.extract_strided_slice %13 {offsets = [0, 24], sizes = [8, 8], strides = [1, 1]} : vector<8x32xf32> to vector<8x8xf32>
    %48 = vector.shape_cast %22 : vector<8x16xf32> to vector<1x8x16xf32>
    %49 = vector.shape_cast %29 : vector<8x16xf32> to vector<1x8x16xf32>
    %50 = vector.shape_cast %36 : vector<8x16xf32> to vector<1x8x16xf32>
    %51 = vector.shape_cast %43 : vector<8x16xf32> to vector<1x8x16xf32>
    %52 = tpu.concatenate %48, %49, %50, %51 in 0 : vector<1x8x16xf32>, vector<1x8x16xf32>, vector<1x8x16xf32>, vector<1x8x16xf32> -> vector<4x8x16xf32>
    %53 = vector.shape_cast %25 : vector<8x16xf32> to vector<1x8x16xf32>
    %54 = vector.shape_cast %32 : vector<8x16xf32> to vector<1x8x16xf32>
    %55 = vector.shape_cast %39 : vector<8x16xf32> to vector<1x8x16xf32>
    %56 = vector.shape_cast %46 : vector<8x16xf32> to vector<1x8x16xf32>
    %57 = tpu.concatenate %53, %54, %55, %56 in 0 : vector<1x8x16xf32>, vector<1x8x16xf32>, vector<1x8x16xf32>, vector<1x8x16xf32> -> vector<4x8x16xf32>
    %58 = vector.shape_cast %26 : vector<8x8xf32> to vector<1x8x8xf32>
    %59 = vector.shape_cast %33 : vector<8x8xf32> to vector<1x8x8xf32>
    %60 = vector.shape_cast %40 : vector<8x8xf32> to vector<1x8x8xf32>
    %61 = vector.shape_cast %47 : vector<8x8xf32> to vector<1x8x8xf32>
    %62 = tpu.concatenate %58, %59, %60, %61 in 0 : vector<1x8x8xf32>, vector<1x8x8xf32>, vector<1x8x8xf32>, vector<1x8x8xf32> -> vector<4x8x8xf32>
    "tpu.trace_start"() <{level = 10 : i32, message = "htd,hsd->hts"}> : () -> ()
    %cst_12 = arith.constant dense<0.000000e+00> : vector<4x8x8xf32>
    %63 = tpu.matmul %52, %57, %cst_12 {dimension_numbers = #tpu.dot_dimension_numbers<[2], [2], [1], [1], [0, 0, 0, 1, 1, 1], [0], [0]>} : vector<4x8x16xf32>, vector<4x8x16xf32>, vector<4x8x8xf32> -> vector<4x8x8xf32>
    "tpu.trace_stop"() : () -> ()
    %cst_13 = arith.constant 0.353553385 : f32
    %64 = vector.broadcast %cst_13 : f32 to vector<4x8x8xf32>
    %65 = arith.mulf %63, %64 : vector<4x8x8xf32>
    %66 = vector.shape_cast %10 : vector<8x8xf32> to vector<1x8x8xf32>
    %67 = vector.broadcast %66 : vector<1x8x8xf32> to vector<4x8x8xf32>
    %68 = arith.addf %65, %67 : vector<4x8x8xf32>
    %cst_14 = arith.constant dense<0xFF800000> : vector<4x8xf32>
    %69 = vector.multi_reduction <maximumf>, %68, %cst_14 [2] : vector<4x8x8xf32> to vector<4x8xf32>
    %70 = vector.shape_cast %69 : vector<4x8xf32> to vector<4x8x1xf32>
    %71 = vector.broadcast %70 : vector<4x8x1xf32> to vector<4x8x8xf32>
    %72 = arith.subf %68, %71 : vector<4x8x8xf32>
    %73 = math.exp %72 : vector<4x8x8xf32>
    %cst_15 = arith.constant dense<0.000000e+00> : vector<4x8xf32>
    %74 = vector.multi_reduction <add>, %73, %cst_15 [2] : vector<4x8x8xf32> to vector<4x8xf32>
    %75 = vector.shape_cast %74 : vector<4x8xf32> to vector<4x8x1xf32>
    %76 = tpu.reciprocal %75 {approx = true} : vector<4x8x1xf32> -> vector<4x8x1xf32>
    %77 = vector.broadcast %76 : vector<4x8x1xf32> to vector<4x8x8xf32>
    %78 = arith.mulf %73, %77 : vector<4x8x8xf32>
    "tpu.trace_start"() <{level = 10 : i32, message = "hts,hsd->htd"}> : () -> ()
    %cst_16 = arith.constant dense<0.000000e+00> : vector<4x8x8xf32>
    %79 = tpu.matmul %78, %62, %cst_16 {dimension_numbers = #tpu.dot_dimension_numbers<[2], [1], [1], [2], [0, 0, 0, 1, 1, 2], [0], [0]>} : vector<4x8x8xf32>, vector<4x8x8xf32>, vector<4x8x8xf32> -> vector<4x8x8xf32>
    "tpu.trace_stop"() : () -> ()
    %80 = vector.extract_strided_slice %79 {offsets = [0, 0, 0], sizes = [1, 8, 8], strides = [1, 1, 1]} : vector<4x8x8xf32> to vector<1x8x8xf32>
    %81 = vector.shape_cast %80 : vector<1x8x8xf32> to vector<8x8xf32>
    %82 = vector.extract_strided_slice %79 {offsets = [1, 0, 0], sizes = [1, 8, 8], strides = [1, 1, 1]} : vector<4x8x8xf32> to vector<1x8x8xf32>
    %83 = vector.shape_cast %82 : vector<1x8x8xf32> to vector<8x8xf32>
    %84 = vector.extract_strided_slice %79 {offsets = [2, 0, 0], sizes = [1, 8, 8], strides = [1, 1, 1]} : vector<4x8x8xf32> to vector<1x8x8xf32>
    %85 = vector.shape_cast %84 : vector<1x8x8xf32> to vector<8x8xf32>
    %86 = vector.extract_strided_slice %79 {offsets = [3, 0, 0], sizes = [1, 8, 8], strides = [1, 1, 1]} : vector<4x8x8xf32> to vector<1x8x8xf32>
    %87 = vector.shape_cast %86 : vector<1x8x8xf32> to vector<8x8xf32>
    %88 = tpu.concatenate %81, %83, %85, %87 in 1 : vector<8x8xf32>, vector<8x8xf32>, vector<8x8xf32>, vector<8x8xf32> -> vector<8x32xf32>
    %c0_17 = arith.constant 0 : index
    %c0_18 = arith.constant 0 : index
    %89 = vector.load %arg4[%c0_17, %c0_18] : memref<32x32xf32, #tpu.memory_space<vmem>>, vector<32x32xf32>
    %cst_19 = arith.constant dense<0.000000e+00> : vector<8x32xf32>
    %90 = tpu.matmul %88, %89, %cst_19 {dimension_numbers = #tpu.dot_dimension_numbers<[1], [0], [0], [1], [0, 0, 1, 1], [], []>} : vector<8x32xf32>, vector<32x32xf32>, vector<8x32xf32> -> vector<8x32xf32>
    %c0_20 = arith.constant 0 : index
    %c0_21 = arith.constant 0 : index
    %91 = vector.load %arg5[%c0_20, %c0_21] : memref<1x32xf32, #tpu.memory_space<vmem>>, vector<1x32xf32>
    %92 = vector.shape_cast %91 : vector<1x32xf32> to vector<32xf32>
    %93 = vector.shape_cast %92 : vector<32xf32> to vector<1x32xf32>
    %94 = vector.broadcast %93 : vector<1x32xf32> to vector<8x32xf32>
    %95 = arith.addf %90, %94 : vector<8x32xf32>
    %96 = vector.shape_cast %95 : vector<8x32xf32> to vector<1x8x32xf32>
    %c0_22 = arith.constant 0 : index
    %c0_23 = arith.constant 0 : index
    %c0_24 = arith.constant 0 : index
    %97 = vector.load %arg8[%c0_22, %c0_23, %c0_24] : memref<1x8x32xf32, #tpu.memory_space<vmem>>, vector<1x8x32xf32>
    tpu.vector_store %arg8[%c0_22, %c0_23, %c0_24], %96 {strides = array<i32>} : memref<1x8x32xf32, #tpu.memory_space<vmem>>, vector<1x8x32xf32>,
    return
  }
  func.func @transform_0(%arg0: i32) -> (i32, i32, i32) {
    %c0_i32 = arith.constant 0 : i32
    %c0_i32_0 = arith.constant 0 : i32
    %c0_i32_1 = arith.constant 0 : i32
    return %arg0, %c0_i32, %c0_i32_0 : i32, i32, i32
  }
  func.func @transform_1(%arg0: i32) -> (i32, i32) {
    %c0_i32 = arith.constant 0 : i32
    %c0_i32_0 = arith.constant 0 : i32
    %c0_i32_1 = arith.constant 0 : i32
    return %c0_i32, %c0_i32_0 : i32, i32
  }
  func.func @transform_2(%arg0: i32) -> (i32, i32) {
    %c0_i32 = arith.constant 0 : i32
    %c0_i32_0 = arith.constant 0 : i32
    %c0_i32_1 = arith.constant 0 : i32
    return %c0_i32, %c0_i32_0 : i32, i32
  }
  func.func @transform_3(%arg0: i32) -> (i32, i32) {
    %c0_i32 = arith.constant 0 : i32
    %c0_i32_0 = arith.constant 0 : i32
    %c0_i32_1 = arith.constant 0 : i32
    return %c0_i32, %c0_i32_0 : i32, i32
  }
  func.func @transform_4(%arg0: i32) -> (i32, i32) {
    %c0_i32 = arith.constant 0 : i32
    %c0_i32_0 = arith.constant 0 : i32
    %c0_i32_1 = arith.constant 0 : i32
    return %c0_i32, %c0_i32_0 : i32, i32
  }
  func.func @transform_5(%arg0: i32) -> (i32, i32) {
    %c0_i32 = arith.constant 0 : i32
    %c0_i32_0 = arith.constant 0 : i32
    %c0_i32_1 = arith.constant 0 : i32
    return %c0_i32, %c0_i32_0 : i32, i32
  }
  func.func @transform_6(%arg0: i32) -> (i32, i32) {
    %c0_i32 = arith.constant 0 : i32
    %c0_i32_0 = arith.constant 0 : i32
    %c0_i32_1 = arith.constant 0 : i32
    return %c0_i32, %c0_i32_0 : i32, i32
  }
  func.func @transform_7(%arg0: i32) -> (i32, i32, i32) {
    %c0_i32 = arith.constant 0 : i32
    %c0_i32_0 = arith.constant 0 : i32
    %c0_i32_1 = arith.constant 0 : i32
    return %arg0, %c0_i32, %c0_i32_0 : i32, i32, i32
  }
}

</mosaic_0001>

<llo_original>
// kernel: tpu_custom_call.1
$region0: #{tpu_custom_call.1}
  #allocation0 [shape = 'u32[]', space=smem, size = 0x4, offset = 0x4, fixed_abs, tag = 'smem constant byte address 0x4 - core index']
  #allocation1 [shape = 'u32[72,128]{1,0:T(1,128)}', space=vmem, size = 0x9000, scoped, tag = 'internal scratch']
  %s0 = inlined_call_operand.hbm [shape: f32[8,128], index: 0, kind: input, shape index: {}]
  %s1 = inlined_call_operand.hbm [shape: f32[16,128], index: 1, kind: output, shape index: {}]
  %s2 = sld [smem:[#allocation0]]
  $region41: #{tpu_custom_call.1} parent=0
    _
  %s4 = ssub.s32 1, %s2
  %s5 = scalar_select 0, %s4, %s2
  $region1: #{tpu_custom_call.1} parent=0
    #allocation2 [shape = 'u8[4096]{0}', space=vmem, size = 0x1000, scoped, tag = 'input window, operand 0, single buffered']
    #allocation3 [shape = 's32[2]{0}', space=sflag, size = 0x8, scoped, tag = 'scoped memory for tpu_custom_call.1']
    #allocation4 [shape = 's32[2]{0}', space=sflag, size = 0x8, scoped, tag = 'scoped memory for tpu_custom_call.1']
    #allocation5 [shape = 'u8[8192]{0}', space=vmem, size = 0x2000, scoped, tag = 'output window, operand 0']
    %6 = vsyncpa [#allocation3], 0
    %7 = vsyncpa [#allocation4], 0
    %s8 = scalar_lea.sflag [#allocation4], 1
    %9 = vsyncpa %s8, 0
    loop: start=0, step=1, limit=4
    $region2: #{tpu_custom_call.1} parent=1 // loop_pre_header
      _
    $region3: #{tpu_custom_call.1} parent=1 // loop_header
      %s11 = sphi 0, %s15
      %p12 = scmp.ge.s32.totalorder %s11, 4
      %s19 = sphi 0, %s19
      %s21 = sphi 0, %s19
      %s22 = sphi 0, %s21
      %s36 = sphi 0, %s22
      %s42 = sphi 0, %s44
      %s45 = sphi 0, %s42
      %s46 = sphi 0, %s45
      %s62 = sphi 0, %s46
    $region4: #{tpu_custom_call.1} parent=1 // loop_header_branch
      %14 = sbr.rel (%p12) target = $region8
    $region5: #{tpu_custom_call.1} parent=1 // loop_body
      %s16 = ssub.s32 %s11, 1
      %s17 = ssub.s32 %s11, 2
      %s18 = sadd.s32 %s11, 1
      %s20 = sadd.s32 %s19, 1
      %p23 = scmp.eq.s32.totalorder %s11, 1
      %p24 = scmp.ne.s32.totalorder %s19, %s21
      %p25 = scmp.eq.s32.totalorder %s11, 0
      %p26 = por %p24, %p25
      %p27 = scmp.ne.s32.totalorder %s19, %s21
      %p28 = scmp.eq.s32.totalorder %s16, 1
      %p29 = por %p27, %p28
      %p30 = scmp.ne.s32.totalorder %s21, %s22
      %p31 = scmp.eq.s32.totalorder %s16, 0
      %p32 = por %p30, %p31
      %p33 = scmp.ne.s32.totalorder %s21, %s22
      %p34 = scmp.eq.s32.totalorder %s17, 1
      %p35 = por %p33, %p34
      %p37 = scmp.ne.s32.totalorder %s22, %s36
      %p38 = scmp.eq.s32.totalorder %s17, 0
      %p39 = por %p37, %p38
      %s40 = ssub.s32 %s11, %s18
      %p41 = scmp.eq.s32.totalorder %s40, 0
      %s43 = sadd.s32 %s42, 1
      %s44 = scalar_select %p41, %s42, %s43
      %p47 = pneg %p41
      %p48 = scmp.eq.s32.totalorder %s11, 1
      %p49 = por %p47, %p48
      %p50 = scmp.ne.s32.totalorder %s42, %s45
      %p51 = scmp.eq.s32.totalorder %s11, 0
      %p52 = por %p50, %p51
      %p53 = scmp.ne.s32.totalorder %s42, %s45
      %p54 = scmp.eq.s32.totalorder %s16, 1
      %p55 = por %p53, %p54
      %p56 = scmp.ne.s32.totalorder %s45, %s46
      %p57 = scmp.eq.s32.totalorder %s16, 0
      %p58 = por %p56, %p57
      %p59 = scmp.ne.s32.totalorder %s45, %s46
      %p60 = scmp.eq.s32.totalorder %s17, 1
      %p61 = por %p59, %p60
      %p63 = scmp.ne.s32.totalorder %s46, %s62
      %p64 = scmp.eq.s32.totalorder %s17, 0
      %p65 = por %p63, %p64
      %p66 = scmp.le.s32.totalorder 1, %s11
      %p67 = scmp.lt.s32.totalorder %s11, 3
      %p68 = pnand %p66, %p67
      %p69 = pneg %p68
      // Predicated region
      $region9: #{tpu_custom_call.1} parent=5 // pred_check
        _
      $region10: #{tpu_custom_call.1} parent=5 // pred_check_branch
        %71 = sbr.rel (%p68) target = $region12
      $region11: #{tpu_custom_call.1} parent=5 // pred_region
        %s72 = ssub.s32 %s11, 1
        // Predicated region
        $region13: #{tpu_custom_call.1} parent=11 // pred_check
          %p73 = pneg %p32
        $region14: #{tpu_custom_call.1} parent=11 // pred_check_branch
          %75 = sbr.rel (%p73) target = $region16
        $region15: #{tpu_custom_call.1} parent=11 // pred_region
          %77 = vsyncadd [#allocation3], 0
          %s79 = sshll.u32 %s0, 4
          %s80 = int_to_ptr.hbm [resolvable:$true] %s79
          %s81 = sshll.u32 [#allocation2], 4
          %s82 = int_to_ptr.vmem [resolvable:$true] %s81
          %84 = dma.hbm_to_vmem [thread:$0]  %s80, 128, %s82, [#allocation3]
        $region16: #{tpu_custom_call.1} parent=11 // pred_fallthru
          _
      $region12: #{tpu_custom_call.1} parent=5 // pred_fallthru
        _
      %p85 = scmp.lt.s32.totalorder %s11, 2
      // Predicated region
      $region17: #{tpu_custom_call.1} parent=5 // pred_check
        %p86 = pneg %p85
      $region18: #{tpu_custom_call.1} parent=5 // pred_check_branch
        %88 = sbr.rel (%p86) target = $region20
      $region19: #{tpu_custom_call.1} parent=5 // pred_region
        _
      $region20: #{tpu_custom_call.1} parent=5 // pred_fallthru
        _
      %p89 = scmp.le.s32.totalorder 1, %s11
      %p90 = scmp.lt.s32.totalorder %s11, 3
      %p91 = pnand %p89, %p90
      %p92 = pneg %p91
      // Predicated region
      $region21: #{tpu_custom_call.1} parent=5 // pred_check
        _
      $region22: #{tpu_custom_call.1} parent=5 // pred_check_branch
        %94 = sbr.rel (%p91) target = $region24
      $region23: #{tpu_custom_call.1} parent=5 // pred_region
        %s95 = ssub.s32 %s11, 1
        // Predicated region
        $region25: #{tpu_custom_call.1} parent=23 // pred_check
          %p96 = pneg %p32
        $region26: #{tpu_custom_call.1} parent=23 // pred_check_branch
          %98 = sbr.rel (%p96) target = $region28
        $region27: #{tpu_custom_call.1} parent=23 // pred_region
          %100 = dma.done [#allocation3], 128
        $region28: #{tpu_custom_call.1} parent=23 // pred_fallthru
          _
        %p101 = pneg %p32
        %p102 = pneg %p29
        %p103 = pneg %p58
        %p104 = pneg %p55
        %s105 = sand.u32 %s45, 1
        %s106 = scalar_lea.sflag [#allocation4], %s105
        %s107 = sand.u32 %s45, 1
        %s108 = smul.addr %s107, 8
        %s109 = scalar_lea.vmem [#allocation5], %s108
        %v110 = vld [vmem:[#allocation2] sm:$0xff]
        %111 = vst [vmem:[%s109] sm:$0xff] %v110
        %s112 = sand.u32 %s45, 1
        %s113 = scalar_lea.sflag [#allocation4], %s112
        %s114 = sand.u32 %s45, 1
        %s115 = smul.addr %s114, 8
        %s116 = scalar_lea.vmem [#allocation5], %s115
        // Predicated region
        $region29: #{tpu_custom_call.1} parent=23 // pred_check
          %p117 = pneg %p55
        $region30: #{tpu_custom_call.1} parent=23 // pred_check_branch
          %119 = sbr.rel (%p117) target = $region32
        $region31: #{tpu_custom_call.1} parent=23 // pred_region
          %121 = vsyncadd %s113, 0
          %s122 = smul.addr %s16, 8
          %s123 = scalar_lea.hbm %s1, %s122
          %s125 = sshll.u32 %s116, 4
          %s126 = int_to_ptr.vmem [resolvable:$true] %s125
          %s127 = sshll.u32 %s123, 4
          %s128 = int_to_ptr.hbm [resolvable:$true] %s127
          %130 = dma.vmem_to_hbm [thread:$0]  %s126, 128, %s128, %s113
        $region32: #{tpu_custom_call.1} parent=23 // pred_fallthru
          _
      $region24: #{tpu_custom_call.1} parent=5 // pred_fallthru
        _
      %p131 = scmp.le.s32.totalorder 2, %s11
      // Predicated region
      $region33: #{tpu_custom_call.1} parent=5 // pred_check
        %p132 = pneg %p131
      $region34: #{tpu_custom_call.1} parent=5 // pred_check_branch
        %134 = sbr.rel (%p132) target = $region36
      $region35: #{tpu_custom_call.1} parent=5 // pred_region
        %s135 = ssub.s32 %s11, 2
        // Predicated region
        $region37: #{tpu_custom_call.1} parent=35 // pred_check
          %p136 = pneg %p61
        $region38: #{tpu_custom_call.1} parent=35 // pred_check_branch
          %138 = sbr.rel (%p136) target = $region40
        $region39: #{tpu_custom_call.1} parent=35 // pred_region
          %s139 = sand.u32 %s46, 1
          %s140 = scalar_lea.sflag [#allocation4], %s139
          %s141 = sand.u32 %s46, 1
          %s142 = smul.addr %s141, 8
          %s143 = scalar_lea.vmem [#allocation5], %s142
          %145 = dma.done %s140, 128
        $region40: #{tpu_custom_call.1} parent=35 // pred_fallthru
          _
      $region36: #{tpu_custom_call.1} parent=5 // pred_fallthru
        _
    $region6: #{tpu_custom_call.1} parent=1 // loop_footer
      %s15 = sadd.s32 1, %s11
    $region7: #{tpu_custom_call.1} parent=1 // loop_footer_branch
      %10 = sbr.rel target = $region3
    $region8: #{tpu_custom_call.1} parent=1 // loop_exit
      _
    %146 = vsyncpa [#allocation3], 1
    %s147 = scalar_lea.sflag [#allocation3], 1
    %148 = vsyncpa %s147, 1
    %149 = vsyncpa [#allocation4], 1
    %s150 = scalar_lea.sflag [#allocation4], 1
    %151 = vsyncpa %s150, 1

// kernel: triplet_attention.1
$region0: #{triplet_attention.1}
  #allocation0 [shape = 'u32[]', space=smem, size = 0x4, offset = 0x4, fixed_abs, tag = 'smem constant byte address 0x4 - core index']
  #allocation1 [shape = 'u32[72,128]{1,0:T(1,128)}', space=vmem, size = 0x9000, scoped, tag = 'internal scratch']
  %s0 = inlined_call_operand.vmem [shape: f32[2,8,32], index: 0, kind: input, shape index: {}]
  %s1 = inlined_call_operand.vmem [shape: f32[32,128], index: 1, kind: input, shape index: {}]
  %s2 = inlined_call_operand.vmem [shape: f32[1,128], index: 2, kind: input, shape index: {}]
  %s3 = inlined_call_operand.vmem [shape: f32[32,32], index: 3, kind: input, shape index: {}]
  %s4 = inlined_call_operand.vmem [shape: f32[1,32], index: 4, kind: input, shape index: {}]
  %s5 = inlined_call_operand.vmem [shape: f32[8,8], index: 5, kind: input, shape index: {}]
  %s6 = inlined_call_operand.vmem [shape: f32[8,8], index: 6, kind: input, shape index: {}]
  %s7 = inlined_call_operand.hbm [shape: f32[2,8,32], index: 7, kind: output, shape index: {}]
  %s8 = sld [smem:[#allocation0]]
  $region61: #{triplet_attention.1} parent=0
    _
  %s10 = ssub.s32 1, %s8
  %s11 = scalar_select 0, %s10, %s8
  $region1: #{triplet_attention.1} parent=0
    #allocation2 [shape = 'u8[8192]{0}', space=vmem, size = 0x2000, scoped, tag = 'output window, operand 0']
    #allocation3 [shape = 's32[2]{0}', space=sflag, size = 0x8, scoped, tag = 'scoped memory for triplet_attention.1']
    %12 = vsyncpa [#allocation3], 0
    %s13 = scalar_lea.sflag [#allocation3], 1
    %14 = vsyncpa %s13, 0
    loop: start=0, step=1, limit=4
    $region2: #{triplet_attention.1} parent=1 // loop_pre_header
      _
    $region3: #{triplet_attention.1} parent=1 // loop_header
      %s16 = sphi 0, %s20
      %p17 = scmp.ge.s32.totalorder %s16, 4
      %s26 = sphi 0, %s28
      %s29 = sphi 0, %s26
      %s30 = sphi 0, %s29
      %s46 = sphi 0, %s30
      %s50 = sphi 0, %s50
      %s52 = sphi 0, %s50
      %s53 = sphi 0, %s52
      %s67 = sphi 0, %s53
      %s71 = sphi 0, %s71
      %s73 = sphi 0, %s71
      %s74 = sphi 0, %s73
      %s88 = sphi 0, %s74
      %s92 = sphi 0, %s92
      %s94 = sphi 0, %s92
      %s95 = sphi 0, %s94
      %s109 = sphi 0, %s95
      %s113 = sphi 0, %s113
      %s115 = sphi 0, %s113
      %s116 = sphi 0, %s115
      %s130 = sphi 0, %s116
      %s134 = sphi 0, %s134
      %s136 = sphi 0, %s134
      %s137 = sphi 0, %s136
      %s151 = sphi 0, %s137
      %s155 = sphi 0, %s155
      %s157 = sphi 0, %s155
      %s158 = sphi 0, %s157
      %s172 = sphi 0, %s158
      %s178 = sphi 0, %s180
      %s181 = sphi 0, %s178
      %s182 = sphi 0, %s181
      %s198 = sphi 0, %s182
    $region4: #{triplet_attention.1} parent=1 // loop_header_branch
      %19 = sbr.rel (%p17) target = $region8
    $region5: #{triplet_attention.1} parent=1 // loop_body
      %s21 = ssub.s32 %s16, 1
      %s22 = ssub.s32 %s16, 2
      %s23 = sadd.s32 %s16, 1
      %s24 = ssub.s32 %s16, %s23
      %p25 = scmp.eq.s32.totalorder %s24, 0
      %s27 = sadd.s32 %s26, 1
      %s28 = scalar_select %p25, %s26, %s27
      %p31 = pneg %p25
      %p32 = scmp.eq.s32.totalorder %s16, 1
      %p33 = por %p31, %p32
      %p34 = scmp.ne.s32.totalorder %s26, %s29
      %p35 = scmp.eq.s32.totalorder %s16, 0
      %p36 = por %p34, %p35
      %p37 = scmp.ne.s32.totalorder %s26, %s29
      %p38 = scmp.eq.s32.totalorder %s21, 1
      %p39 = por %p37, %p38
      %p40 = scmp.ne.s32.totalorder %s29, %s30
      %p41 = scmp.eq.s32.totalorder %s21, 0
      %p42 = por %p40, %p41
      %p43 = scmp.ne.s32.totalorder %s29, %s30
      %p44 = scmp.eq.s32.totalorder %s22, 1
      %p45 = por %p43, %p44
      %p47 = scmp.ne.s32.totalorder %s30, %s46
      %p48 = scmp.eq.s32.totalorder %s22, 0
      %p49 = por %p47, %p48
      %s51 = sadd.s32 %s50, 1
      %p54 = scmp.eq.s32.totalorder %s16, 1
      %p55 = scmp.ne.s32.totalorder %s50, %s52
      %p56 = scmp.eq.s32.totalorder %s16, 0
      %p57 = por %p55, %p56
      %p58 = scmp.ne.s32.totalorder %s50, %s52
      %p59 = scmp.eq.s32.totalorder %s21, 1
      %p60 = por %p58, %p59
      %p61 = scmp.ne.s32.totalorder %s52, %s53
      %p62 = scmp.eq.s32.totalorder %s21, 0
      %p63 = por %p61, %p62
      %p64 = scmp.ne.s32.totalorder %s52, %s53
      %p65 = scmp.eq.s32.totalorder %s22, 1
      %p66 = por %p64, %p65
      %p68 = scmp.ne.s32.totalorder %s53, %s67
      %p69 = scmp.eq.s32.totalorder %s22, 0
      %p70 = por %p68, %p69
      %s72 = sadd.s32 %s71, 1
      %p75 = scmp.eq.s32.totalorder %s16, 1
      %p76 = scmp.ne.s32.totalorder %s71, %s73
      %p77 = scmp.eq.s32.totalorder %s16, 0
      %p78 = por %p76, %p77
      %p79 = scmp.ne.s32.totalorder %s71, %s73
      %p80 = scmp.eq.s32.totalorder %s21, 1
      %p81 = por %p79, %p80
      %p82 = scmp.ne.s32.totalorder %s73, %s74
      %p83 = scmp.eq.s32.totalorder %s21, 0
      %p84 = por %p82, %p83
      %p85 = scmp.ne.s32.totalorder %s73, %s74
      %p86 = scmp.eq.s32.totalorder %s22, 1
      %p87 = por %p85, %p86
      %p89 = scmp.ne.s32.totalorder %s74, %s88
      %p90 = scmp.eq.s32.totalorder %s22, 0
      %p91 = por %p89, %p90
      %s93 = sadd.s32 %s92, 1
      %p96 = scmp.eq.s32.totalorder %s16, 1
      %p97 = scmp.ne.s32.totalorder %s92, %s94
      %p98 = scmp.eq.s32.totalorder %s16, 0
      %p99 = por %p97, %p98
      %p100 = scmp.ne.s32.totalorder %s92, %s94
      %p101 = scmp.eq.s32.totalorder %s21, 1
      %p102 = por %p100, %p101
      %p103 = scmp.ne.s32.totalorder %s94, %s95
      %p104 = scmp.eq.s32.totalorder %s21, 0
      %p105 = por %p103, %p104
      %p106 = scmp.ne.s32.totalorder %s94, %s95
      %p107 = scmp.eq.s32.totalorder %s22, 1
      %p108 = por %p106, %p107
      %p110 = scmp.ne.s32.totalorder %s95, %s109
      %p111 = scmp.eq.s32.totalorder %s22, 0
      %p112 = por %p110, %p111
      %s114 = sadd.s32 %s113, 1
      %p117 = scmp.eq.s32.totalorder %s16, 1
      %p118 = scmp.ne.s32.totalorder %s113, %s115
      %p119 = scmp.eq.s32.totalorder %s16, 0
      %p120 = por %p118, %p119
      %p121 = scmp.ne.s32.totalorder %s113, %s115
      %p122 = scmp.eq.s32.totalorder %s21, 1
      %p123 = por %p121, %p122
      %p124 = scmp.ne.s32.totalorder %s115, %s116
      %p125 = scmp.eq.s32.totalorder %s21, 0
      %p126 = por %p124, %p125
      %p127 = scmp.ne.s32.totalorder %s115, %s116
      %p128 = scmp.eq.s32.totalorder %s22, 1
      %p129 = por %p127, %p128
      %p131 = scmp.ne.s32.totalorder %s116, %s130
      %p132 = scmp.eq.s32.totalorder %s22, 0
      %p133 = por %p131, %p132
      %s135 = sadd.s32 %s134, 1
      %p138 = scmp.eq.s32.totalorder %s16, 1
      %p139 = scmp.ne.s32.totalorder %s134, %s136
      %p140 = scmp.eq.s32.totalorder %s16, 0
      %p141 = por %p139, %p140
      %p142 = scmp.ne.s32.totalorder %s134, %s136
      %p143 = scmp.eq.s32.totalorder %s21, 1
      %p144 = por %p142, %p143
      %p145 = scmp.ne.s32.totalorder %s136, %s137
      %p146 = scmp.eq.s32.totalorder %s21, 0
      %p147 = por %p145, %p146
      %p148 = scmp.ne.s32.totalorder %s136, %s137
      %p149 = scmp.eq.s32.totalorder %s22, 1
      %p150 = por %p148, %p149
      %p152 = scmp.ne.s32.totalorder %s137, %s151
      %p153 = scmp.eq.s32.totalorder %s22, 0
      %p154 = por %p152, %p153
      %s156 = sadd.s32 %s155, 1
      %p159 = scmp.eq.s32.totalorder %s16, 1
      %p160 = scmp.ne.s32.totalorder %s155, %s157
      %p161 = scmp.eq.s32.totalorder %s16, 0
      %p162 = por %p160, %p161
      %p163 = scmp.ne.s32.totalorder %s155, %s157
      %p164 = scmp.eq.s32.totalorder %s21, 1
      %p165 = por %p163, %p164
      %p166 = scmp.ne.s32.totalorder %s157, %s158
      %p167 = scmp.eq.s32.totalorder %s21, 0
      %p168 = por %p166, %p167
      %p169 = scmp.ne.s32.totalorder %s157, %s158
      %p170 = scmp.eq.s32.totalorder %s22, 1
      %p171 = por %p169, %p170
      %p173 = scmp.ne.s32.totalorder %s158, %s172
      %p174 = scmp.eq.s32.totalorder %s22, 0
      %p175 = por %p173, %p174
      %s176 = ssub.s32 %s16, %s23
      %p177 = scmp.eq.s32.totalorder %s176, 0
      %s179 = sadd.s32 %s178, 1
      %s180 = scalar_select %p177, %s178, %s179
      %p183 = pneg %p177
      %p184 = scmp.eq.s32.totalorder %s16, 1
      %p185 = por %p183, %p184
      %p186 = scmp.ne.s32.totalorder %s178, %s181
      %p187 = scmp.eq.s32.totalorder %s16, 0
      %p188 = por %p186, %p187
      %p189 = scmp.ne.s32.totalorder %s178, %s181
      %p190 = scmp.eq.s32.totalorder %s21, 1
      %p191 = por %p189, %p190
      %p192 = scmp.ne.s32.totalorder %s181, %s182
      %p193 = scmp.eq.s32.totalorder %s21, 0
      %p194 = por %p192, %p193
      %p195 = scmp.ne.s32.totalorder %s181, %s182
      %p196 = scmp.eq.s32.totalorder %s22, 1
      %p197 = por %p195, %p196
      %p199 = scmp.ne.s32.totalorder %s182, %s198
      %p200 = scmp.eq.s32.totalorder %s22, 0
      %p201 = por %p199, %p200
      %p202 = scmp.le.s32.totalorder 1, %s16
      %p203 = scmp.lt.s32.totalorder %s16, 3
      %p204 = pnand %p202, %p203
      %p205 = pneg %p204
      // Predicated region
      $region9: #{triplet_attention.1} parent=5 // pred_check
        _
      $region10: #{triplet_attention.1} parent=5 // pred_check_branch
        %207 = sbr.rel (%p204) target = $region12
      $region11: #{triplet_attention.1} parent=5 // pred_region
        %s208 = ssub.s32 %s16, 1
        // Predicated region
        $region13: #{triplet_attention.1} parent=11 // pred_check
          %p209 = pneg %p63
        $region14: #{triplet_attention.1} parent=11 // pred_check_branch
          %211 = sbr.rel (%p209) target = $region16
        $region15: #{triplet_attention.1} parent=11 // pred_region
          _
        $region16: #{triplet_attention.1} parent=11 // pred_fallthru
          _
        // Predicated region
        $region17: #{triplet_attention.1} parent=11 // pred_check
          %p212 = pneg %p84
        $region18: #{triplet_attention.1} parent=11 // pred_check_branch
          %214 = sbr.rel (%p212) target = $region20
        $region19: #{triplet_attention.1} parent=11 // pred_region
          _
        $region20: #{triplet_attention.1} parent=11 // pred_fallthru
          _
        // Predicated region
        $region21: #{triplet_attention.1} parent=11 // pred_check
          %p215 = pneg %p105
        $region22: #{triplet_attention.1} parent=11 // pred_check_branch
          %217 = sbr.rel (%p215) target = $region24
        $region23: #{triplet_attention.1} parent=11 // pred_region
          _
        $region24: #{triplet_attention.1} parent=11 // pred_fallthru
          _
        // Predicated region
        $region25: #{triplet_attention.1} parent=11 // pred_check
          %p218 = pneg %p126
        $region26: #{triplet_attention.1} parent=11 // pred_check_branch
          %220 = sbr.rel (%p218) target = $region28
        $region27: #{triplet_attention.1} parent=11 // pred_region
          _
        $region28: #{triplet_attention.1} parent=11 // pred_fallthru
          _
        // Predicated region
        $region29: #{triplet_attention.1} parent=11 // pred_check
          %p221 = pneg %p147
        $region30: #{triplet_attention.1} parent=11 // pred_check_branch
          %223 = sbr.rel (%p221) target = $region32
        $region31: #{triplet_attention.1} parent=11 // pred_region
          _
        $region32: #{triplet_attention.1} parent=11 // pred_fallthru
          _
        // Predicated region
        $region33: #{triplet_attention.1} parent=11 // pred_check
          %p224 = pneg %p168
        $region34: #{triplet_attention.1} parent=11 // pred_check_branch
          %226 = sbr.rel (%p224) target = $region36
        $region35: #{triplet_attention.1} parent=11 // pred_region
          _
        $region36: #{triplet_attention.1} parent=11 // pred_fallthru
          _
      $region12: #{triplet_attention.1} parent=5 // pred_fallthru
        _
      %p227 = scmp.lt.s32.totalorder %s16, 2
      // Predicated region
      $region37: #{triplet_attention.1} parent=5 // pred_check
        %p228 = pneg %p227
      $region38: #{triplet_attention.1} parent=5 // pred_check_branch
        %230 = sbr.rel (%p228) target = $region40
      $region39: #{triplet_attention.1} parent=5 // pred_region
        // Predicated region
        $region41: #{triplet_attention.1} parent=39 // pred_check
          %p231 = pneg %p36
        $region42: #{triplet_attention.1} parent=39 // pred_check_branch
          %233 = sbr.rel (%p231) target = $region44
        $region43: #{triplet_attention.1} parent=39 // pred_region
          %p234 = scmp.lt.s32.totalorder %s16, 1
          %s235 = scalar_select %p234, %s16, 1
          %s236 = smul.addr %s235, 8
          %s237 = scalar_lea.vmem %s0, %s236
        $region44: #{triplet_attention.1} parent=39 // pred_fallthru
          _
      $region40: #{triplet_attention.1} parent=5 // pred_fallthru
        _
      %p238 = scmp.le.s32.totalorder 1, %s16
      %p239 = scmp.lt.s32.totalorder %s16, 3
      %p240 = pnand %p238, %p239
      %p241 = pneg %p240
      // Predicated region
      $region45: #{triplet_attention.1} parent=5 // pred_check
        _
      $region46: #{triplet_attention.1} parent=5 // pred_check_branch
        %243 = sbr.rel (%p240) target = $region48
      $region47: #{triplet_attention.1} parent=5 // pred_region
        %s244 = ssub.s32 %s16, 1
        %p245 = scmp.lt.s32.totalorder %s21, 1
        %s246 = scalar_select %p245, %s21, 1
        %s247 = smul.addr %s246, 8
        %s248 = scalar_lea.vmem %s0, %s247
        %p249 = pneg %p42
        %p250 = pneg %p39
        %p251 = pneg %p63
        %p252 = pneg %p60
        %p253 = pneg %p84
        %p254 = pneg %p81
        %p255 = pneg %p105
        %p256 = pneg %p102
        %p257 = pneg %p126
        %p258 = pneg %p123
        %p259 = pneg %p147
        %p260 = pneg %p144
        %p261 = pneg %p168
        %p262 = pneg %p165
        %p263 = pneg %p194
        %p264 = pneg %p191
        %s265 = sand.u32 %s181, 1
        %s266 = scalar_lea.sflag [#allocation3], %s265
        %s267 = sand.u32 %s181, 1
        %s268 = smul.addr %s267, 8
        %s269 = scalar_lea.vmem [#allocation2], %s268
        %p270 = scmp.lt.s32.totalorder %s21, 1
        %s271 = scalar_select %p270, %s21, 1
        %s272 = smul.addr %s271, 8
        %s273 = scalar_lea.vmem %s0, %s272
        %v274 = vld [vmem:[%s273] sm:$0xff]
        %v275 = vld [vmem:[%s1] sm:$0xff]
        %v276 = vld [vmem:[%s1 + $0x8] sm:$0xff]
        %v277 = vld [vmem:[%s1 + $0x10] sm:$0xff]
        %v278 = vld [vmem:[%s1 + $0x18] sm:$0xff]
        %v279 = vld [vmem:[%s2] sm:$0x1]
        %v281 = vperm.slane %v279, 0
        %vm283 = vcmask 261120
        %v285 = vsel %vm283, %v274, 0
        %287 = vmatpush.msra.mxu0 0.0
        %288 = vmatpush.msra.mxu0 0.0
        %289 = vmatpush.msra.mxu0 0.0
        %290 = vmatpush.msra.mxu0 0.0
        %291 = vmatpush.msra.mxu0 0.0
        %292 = vmatpush.msra.mxu0 0.0
        %293 = vmatpush.msra.mxu0 0.0
        %294 = vmatpush.msra.mxu0 0.0
        %295 = vmatpush.msra.mxu0 0.0
        %296 = vmatpush.msra.mxu0 0.0
        %297 = vmatpush.msra.mxu0 0.0
        %298 = vmatpush.msra.mxu0 0.0
        %299 = vmatpush.msra.mxu0 %v278
        %300 = vmatpush.msra.mxu0 %v277
        %301 = vmatpush.msra.mxu0 %v276
        %302 = vmatpush.msra.mxu0 %v275
        %303 = vmatmul.f32.gmra.mxu0 %v285
        %v304 = vpop.f32.mrf.mxu0
        %v305 = vadd.f32 %v281, %v304
        %306 = vdwg.mxu0
        %v307 = vld [vmem:[%s5] sm:$0xff]
        %v308 = vld [vmem:[%s6] sm:$0xff]
        %310 = vrot.lane.b32.xlu0 %v305, 96
        %v311 = vpop.permute.xlu0 %310
        %v313 = vmul.f32 %v305, %v311
        %v314 = vmul.f32 %v313, 0.35355338
        %316 = vrot.lane.b32.xlu0 %v314, 96
        %v317 = vpop.permute.xlu0 %316
        %vm319 = vcmask 64512
        %v321 = vsel %vm319, %v307, 0
        %323 = vmatpush.msra.mxu0 0.0
        %324 = vmatpush.msra.mxu0 0.0
        %325 = vmatpush.msra.mxu0 0.0
        %326 = vmatpush.msra.mxu0 0.0
        %327 = vmatpush.msra.mxu0 0.0
        %328 = vmatpush.msra.mxu0 0.0
        %329 = vmatpush.msra.mxu0 0.0
        %330 = vmatpush.msra.mxu0 0.0
        %331 = vmatpush.msra.mxu0 0.0
        %332 = vmatpush.msra.mxu0 0.0
        %333 = vmatpush.msra.mxu0 0.0
        %334 = vmatpush.msra.mxu0 0.0
        %335 = vmatpush.msra.mxu0 0.0
        %336 = vmatpush.msra.mxu0 0.0
        %337 = vmatpush.msra.mxu0 0.0
        %338 = vmatpush.msra.mxu0 %v317
        %339 = vmatmul.f32.gmra.mxu0 %v321
        %v340 = vpop.f32.mrf.mxu0
        %v341 = vadd.f32 0.0, %v340
        %342 = vdwg.mxu0
        %343 = vrot.lane.b32.xlu0 %v305, 32
        %v344 = vpop.permute.xlu0 %343
        %v346 = vmul.f32 %v305, %v344
        %348 = vrot.lane.b32.xlu0 %v346, 8
        %v349 = vpop.permute.xlu0 %348
        %v351 = vsel %vm319, %v305, %v349
        %353 = vrot.lane.b32.xlu0 %v341, 8
        %v354 = vpop.permute.xlu0 %353
        %v356 = vsel %vm319, %v311, %v354
        %357 = vrot.lane.b32.xlu0 %v305, 120
        %v358 = vpop.permute.xlu0 %357
        %v360 = vsel %vm319, %v358, %v346
        %361 = vrot.lane.b32.xlu0 %v305, 88
        %v362 = vpop.permute.xlu0 %361
        %v364 = vsel %vm319, %v362, %v341
        %365 = vrot.lane.b32.xlu0 %v305, 112
        %v366 = vpop.permute.xlu0 %365
        %368 = vrot.lane.b32.xlu0 %v346, 120
        %v369 = vpop.permute.xlu0 %368
        %v371 = vsel %vm319, %v366, %v369
        %372 = vrot.lane.b32.xlu0 %v305, 80
        %v373 = vpop.permute.xlu0 %372
        %375 = vrot.lane.b32.xlu0 %v341, 120
        %v376 = vpop.permute.xlu0 %375
        %v378 = vsel %vm319, %v373, %v376
        %379 = vrot.lane.b32.xlu0 %v305, 104
        %v380 = vpop.permute.xlu0 %379
        %382 = vrot.lane.b32.xlu0 %v346, 112
        %v383 = vpop.permute.xlu0 %382
        %v385 = vsel %vm319, %v380, %v383
        %386 = vrot.lane.b32.xlu0 %v305, 72
        %v387 = vpop.permute.xlu0 %386
        %389 = vrot.lane.b32.xlu0 %v341, 112
        %v390 = vpop.permute.xlu0 %389
        %v392 = vsel %vm319, %v387, %v390
        %vm393 = vcmask 130048
        %v395 = vsel %vm393, %v351, 0
        %v398 = vsel %vm393, %v356, 0
        %400 = vmatpush.xpose.msra.mxu0 0.0
        %401 = vmatpush.xpose.msra.mxu0 0.0
        %402 = vmatpush.xpose.msra.mxu0 0.0
        %403 = vmatpush.xpose.msra.mxu0 0.0
        %404 = vmatpush.xpose.msra.mxu0 0.0
        %405 = vmatpush.xpose.msra.mxu0 0.0
        %406 = vmatpush.xpose.msra.mxu0 0.0
        %407 = vmatpush.xpose.msra.mxu0 0.0
        %408 = vmatpush.xpose.msra.mxu0 0.0
        %409 = vmatpush.xpose.msra.mxu0 0.0
        %410 = vmatpush.xpose.msra.mxu0 0.0
        %411 = vmatpush.xpose.msra.mxu0 0.0
        %412 = vmatpush.xpose.msra.mxu0 0.0
        %413 = vmatpush.xpose.msra.mxu0 0.0
        %414 = vmatpush.xpose.msra.mxu0 0.0
        %415 = vmatpush.xpose.msra.mxu0 %v398
        %416 = vmatmul.f32.gmra.mxu0 %v395
        %v417 = vpop.f32.mrf.mxu0
        %v418 = vadd.f32 0.0, %v417
        %419 = vdwg.mxu0
        %v421 = vsel %vm393, %v360, 0
        %v424 = vsel %vm393, %v364, 0
        %426 = vmatpush.xpose.msra.mxu0 0.0
        %427 = vmatpush.xpose.msra.mxu0 0.0
        %428 = vmatpush.xpose.msra.mxu0 0.0
        %429 = vmatpush.xpose.msra.mxu0 0.0
        %430 = vmatpush.xpose.msra.mxu0 0.0
        %431 = vmatpush.xpose.msra.mxu0 0.0
        %432 = vmatpush.xpose.msra.mxu0 0.0
        %433 = vmatpush.xpose.msra.mxu0 0.0
        %434 = vmatpush.xpose.msra.mxu0 0.0
        %435 = vmatpush.xpose.msra.mxu0 0.0
        %436 = vmatpush.xpose.msra.mxu0 0.0
        %437 = vmatpush.xpose.msra.mxu0 0.0
        %438 = vmatpush.xpose.msra.mxu0 0.0
        %439 = vmatpush.xpose.msra.mxu0 0.0
        %440 = vmatpush.xpose.msra.mxu0 0.0
        %441 = vmatpush.xpose.msra.mxu0 %v424
        %442 = vmatmul.f32.gmra.mxu0 %v421
        %v443 = vpop.f32.mrf.mxu0
        %v444 = vadd.f32 0.0, %v443
        %445 = vdwg.mxu0
        %v447 = vsel %vm393, %v371, 0
        %v450 = vsel %vm393, %v378, 0
        %452 = vmatpush.xpose.msra.mxu0 0.0
        %453 = vmatpush.xpose.msra.mxu0 0.0
        %454 = vmatpush.xpose.msra.mxu0 0.0
        %455 = vmatpush.xpose.msra.mxu0 0.0
        %456 = vmatpush.xpose.msra.mxu0 0.0
        %457 = vmatpush.xpose.msra.mxu0 0.0
        %458 = vmatpush.xpose.msra.mxu0 0.0
        %459 = vmatpush.xpose.msra.mxu0 0.0
        %460 = vmatpush.xpose.msra.mxu0 0.0
        %461 = vmatpush.xpose.msra.mxu0 0.0
        %462 = vmatpush.xpose.msra.mxu0 0.0
        %463 = vmatpush.xpose.msra.mxu0 0.0
        %464 = vmatpush.xpose.msra.mxu0 0.0
        %465 = vmatpush.xpose.msra.mxu0 0.0
        %466 = vmatpush.xpose.msra.mxu0 0.0
        %467 = vmatpush.xpose.msra.mxu0 %v450
        %468 = vmatmul.f32.gmra.mxu0 %v447
        %v469 = vpop.f32.mrf.mxu0
        %v470 = vadd.f32 0.0, %v469
        %471 = vdwg.mxu0
        %v473 = vsel %vm393, %v385, 0
        %v476 = vsel %vm393, %v392, 0
        %478 = vmatpush.xpose.msra.mxu0 0.0
        %479 = vmatpush.xpose.msra.mxu0 0.0
        %480 = vmatpush.xpose.msra.mxu0 0.0
        %481 = vmatpush.xpose.msra.mxu0 0.0
        %482 = vmatpush.xpose.msra.mxu0 0.0
        %483 = vmatpush.xpose.msra.mxu0 0.0
        %484 = vmatpush.xpose.msra.mxu0 0.0
        %485 = vmatpush.xpose.msra.mxu0 0.0
        %486 = vmatpush.xpose.msra.mxu0 0.0
        %487 = vmatpush.xpose.msra.mxu0 0.0
        %488 = vmatpush.xpose.msra.mxu0 0.0
        %489 = vmatpush.xpose.msra.mxu0 0.0
        %490 = vmatpush.xpose.msra.mxu0 0.0
        %491 = vmatpush.xpose.msra.mxu0 0.0
        %492 = vmatpush.xpose.msra.mxu0 0.0
        %493 = vmatpush.xpose.msra.mxu0 %v476
        %494 = vmatmul.f32.gmra.mxu0 %v473
        %v495 = vpop.f32.mrf.mxu0
        %v496 = vadd.f32 0.0, %v495
        %497 = vdwg.mxu0
        %v498 = vmul.f32 %v418, 0.35355338
        %v499 = vmul.f32 %v444, 0.35355338
        %v500 = vmul.f32 %v470, 0.35355338
        %v501 = vmul.f32 %v496, 0.35355338
        %v502 = vadd.f32 %v498, %v308
        %v503 = vadd.f32 %v499, %v308
        %v504 = vadd.f32 %v500, %v308
        %v505 = vadd.f32 %v501, %v308
        %v506 = vsel %vm319, %v502, -inf
        %507 = vmax.xlane.f32.xlu0 %v506
        %v508 = vpop.xlane.xlu0 %507
        %v509 = vsel %vm319, %v503, -inf
        %510 = vmax.xlane.f32.xlu0 %v509
        %v511 = vpop.xlane.xlu0 %510
        %v512 = vsel %vm319, %v504, -inf
        %513 = vmax.xlane.f32.xlu0 %v512
        %v514 = vpop.xlane.xlu0 %513
        %v515 = vsel %vm319, %v505, -inf
        %516 = vmax.xlane.f32.xlu0 %v515
        %v517 = vpop.xlane.xlu0 %516
        %v518 = vsub.f32 %v502, %v508
        %v519 = vsub.f32 %v503, %v511
        %v520 = vsub.f32 %v504, %v514
        %v521 = vsub.f32 %v505, %v517
        %v522 = vmul.f32 %v518, 1.442695
        %v523 = vpow.pop %v522
        %v524 = vmul.f32 %v519, 1.442695
        %v525 = vpow.pop %v524
        %v526 = vmul.f32 %v520, 1.442695
        %v527 = vpow.pop %v526
        %v528 = vmul.f32 %v521, 1.442695
        %v529 = vpow.pop %v528
        %v530 = vsel %vm319, %v523, 0.0
        %531 = vadd.xlane.f32.xlu0 %v530
        %v532 = vpop.xlane.xlu0 %531
        %v533 = vsel %vm319, %v525, 0.0
        %534 = vadd.xlane.f32.xlu0 %v533
        %v535 = vpop.xlane.xlu0 %534
        %v536 = vsel %vm319, %v527, 0.0
        %537 = vadd.xlane.f32.xlu0 %v536
        %v538 = vpop.xlane.xlu0 %537
        %v539 = vsel %vm319, %v529, 0.0
        %540 = vadd.xlane.f32.xlu0 %v539
        %v541 = vpop.xlane.xlu0 %540
        %v542 = vrcp.pop %v532
        %v543 = vrcp.pop %v535
        %v544 = vrcp.pop %v538
        %v545 = vrcp.pop %v541
        %v546 = vmul.f32 %v523, %v542
        %v547 = vmul.f32 %v525, %v543
        %v548 = vmul.f32 %v527, %v544
        %v549 = vmul.f32 %v529, %v545
        %550 = vrot.lane.b32.xlu0 %v305, 64
        %v551 = vpop.permute.xlu0 %550
        %v554 = vsel %vm319, %v546, 0
        %556 = vmatpush.msra.mxu0 0.0
        %557 = vmatpush.msra.mxu0 0.0
        %558 = vmatpush.msra.mxu0 0.0
        %559 = vmatpush.msra.mxu0 0.0
        %560 = vmatpush.msra.mxu0 0.0
        %561 = vmatpush.msra.mxu0 0.0
        %562 = vmatpush.msra.mxu0 0.0
        %563 = vmatpush.msra.mxu0 0.0
        %564 = vmatpush.msra.mxu0 0.0
        %565 = vmatpush.msra.mxu0 0.0
        %566 = vmatpush.msra.mxu0 0.0
        %567 = vmatpush.msra.mxu0 0.0
        %568 = vmatpush.msra.mxu0 0.0
        %569 = vmatpush.msra.mxu0 0.0
        %570 = vmatpush.msra.mxu0 0.0
        %571 = vmatpush.msra.mxu0 %v551
        %572 = vmatmul.f32.gmra.mxu0 %v554
        %v573 = vpop.f32.mrf.mxu0
        %v574 = vadd.f32 0.0, %v573
        %575 = vdwg.mxu0
        %576 = vrot.lane.b32.xlu0 %v358, 64
        %v577 = vpop.permute.xlu0 %576
        %v580 = vsel %vm319, %v547, 0
        %582 = vmatpush.msra.mxu0 0.0
        %583 = vmatpush.msra.mxu0 0.0
        %584 = vmatpush.msra.mxu0 0.0
        %585 = vmatpush.msra.mxu0 0.0
        %586 = vmatpush.msra.mxu0 0.0
        %587 = vmatpush.msra.mxu0 0.0
        %588 = vmatpush.msra.mxu0 0.0
        %589 = vmatpush.msra.mxu0 0.0
        %590 = vmatpush.msra.mxu0 0.0
        %591 = vmatpush.msra.mxu0 0.0
        %592 = vmatpush.msra.mxu0 0.0
        %593 = vmatpush.msra.mxu0 0.0
        %594 = vmatpush.msra.mxu0 0.0
        %595 = vmatpush.msra.mxu0 0.0
        %596 = vmatpush.msra.mxu0 0.0
        %597 = vmatpush.msra.mxu0 %v577
        %598 = vmatmul.f32.gmra.mxu0 %v580
        %v599 = vpop.f32.mrf.mxu0
        %v600 = vadd.f32 0.0, %v599
        %601 = vdwg.mxu0
        %602 = vrot.lane.b32.xlu0 %v366, 64
        %v603 = vpop.permute.xlu0 %602
        %v606 = vsel %vm319, %v548, 0
        %608 = vmatpush.msra.mxu0 0.0
        %609 = vmatpush.msra.mxu0 0.0
        %610 = vmatpush.msra.mxu0 0.0
        %611 = vmatpush.msra.mxu0 0.0
        %612 = vmatpush.msra.mxu0 0.0
        %613 = vmatpush.msra.mxu0 0.0
        %614 = vmatpush.msra.mxu0 0.0
        %615 = vmatpush.msra.mxu0 0.0
        %616 = vmatpush.msra.mxu0 0.0
        %617 = vmatpush.msra.mxu0 0.0
        %618 = vmatpush.msra.mxu0 0.0
        %619 = vmatpush.msra.mxu0 0.0
        %620 = vmatpush.msra.mxu0 0.0
        %621 = vmatpush.msra.mxu0 0.0
        %622 = vmatpush.msra.mxu0 0.0
        %623 = vmatpush.msra.mxu0 %v603
        %624 = vmatmul.f32.gmra.mxu0 %v606
        %v625 = vpop.f32.mrf.mxu0
        %v626 = vadd.f32 0.0, %v625
        %627 = vdwg.mxu0
        %628 = vrot.lane.b32.xlu0 %v380, 64
        %v629 = vpop.permute.xlu0 %628
        %v632 = vsel %vm319, %v549, 0
        %634 = vmatpush.msra.mxu0 0.0
        %635 = vmatpush.msra.mxu0 0.0
        %636 = vmatpush.msra.mxu0 0.0
        %637 = vmatpush.msra.mxu0 0.0
        %638 = vmatpush.msra.mxu0 0.0
        %639 = vmatpush.msra.mxu0 0.0
        %640 = vmatpush.msra.mxu0 0.0
        %641 = vmatpush.msra.mxu0 0.0
        %642 = vmatpush.msra.mxu0 0.0
        %643 = vmatpush.msra.mxu0 0.0
        %644 = vmatpush.msra.mxu0 0.0
        %645 = vmatpush.msra.mxu0 0.0
        %646 = vmatpush.msra.mxu0 0.0
        %647 = vmatpush.msra.mxu0 0.0
        %648 = vmatpush.msra.mxu0 0.0
        %649 = vmatpush.msra.mxu0 %v629
        %650 = vmatmul.f32.gmra.mxu0 %v632
        %v651 = vpop.f32.mrf.mxu0
        %v652 = vadd.f32 0.0, %v651
        %653 = vdwg.mxu0
        %655 = vrot.lane.b32.xlu0 %v600, 8
        %v656 = vpop.permute.xlu0 %655
        %659 = vrot.lane.b32.xlu0 %v626, 16
        %v660 = vpop.permute.xlu0 %659
        %663 = vrot.lane.b32.xlu0 %v652, 24
        %v664 = vpop.permute.xlu0 %663
        %v666 = vsel %vm319, %v574, %v656
        %v667 = vsel %vm393, %v666, %v660
        %vm668 = vcmask 195584
        %v669 = vsel %vm668, %v667, %v664
        %v670 = vld [vmem:[%s3] sm:$0xff]
        %v671 = vld [vmem:[%s3 + $0x8] sm:$0xff]
        %v672 = vld [vmem:[%s3 + $0x10] sm:$0xff]
        %v673 = vld [vmem:[%s3 + $0x18] sm:$0xff]
        %v674 = vld [vmem:[%s4] sm:$0x1]
        %v676 = vperm.slane %v674, 0
        %v679 = vsel %vm283, %v669, 0
        %681 = vmatpush.msra.mxu0 0.0
        %682 = vmatpush.msra.mxu0 0.0
        %683 = vmatpush.msra.mxu0 0.0
        %684 = vmatpush.msra.mxu0 0.0
        %685 = vmatpush.msra.mxu0 0.0
        %686 = vmatpush.msra.mxu0 0.0
        %687 = vmatpush.msra.mxu0 0.0
        %688 = vmatpush.msra.mxu0 0.0
        %689 = vmatpush.msra.mxu0 0.0
        %690 = vmatpush.msra.mxu0 0.0
        %691 = vmatpush.msra.mxu0 0.0
        %692 = vmatpush.msra.mxu0 0.0
        %693 = vmatpush.msra.mxu0 %v673
        %694 = vmatpush.msra.mxu0 %v672
        %695 = vmatpush.msra.mxu0 %v671
        %696 = vmatpush.msra.mxu0 %v670
        %697 = vmatmul.f32.gmra.mxu0 %v679
        %v698 = vpop.f32.mrf.mxu0
        %v699 = vadd.f32 %v676, %v698
        %700 = vdwg.mxu0
        %701 = vst.msk [vmem:[%s269] sm:$0xff] %vm283, %v699
        %s702 = sand.u32 %s181, 1
        %s703 = scalar_lea.sflag [#allocation3], %s702
        %s704 = sand.u32 %s181, 1
        %s705 = smul.addr %s704, 8
        %s706 = scalar_lea.vmem [#allocation2], %s705
        // Predicated region
        $region49: #{triplet_attention.1} parent=47 // pred_check
          %p707 = pneg %p191
        $region50: #{triplet_attention.1} parent=47 // pred_check_branch
          %709 = sbr.rel (%p707) target = $region52
        $region51: #{triplet_attention.1} parent=47 // pred_region
          %711 = vsyncadd %s703, 0
          %s712 = smul.addr %s21, 8
          %s713 = scalar_lea.hbm %s7, %s712
          %s715 = sshll.u32 %s706, 4
          %s716 = int_to_ptr.vmem [resolvable:$true] %s715
          %s717 = sshll.u32 %s713, 4
          %s718 = int_to_ptr.hbm [resolvable:$true] %s717
          %720 = dma.vmem_to_hbm [thread:$0]  %s716, 128, %s718, %s703
        $region52: #{triplet_attention.1} parent=47 // pred_fallthru
          _
      $region48: #{triplet_attention.1} parent=5 // pred_fallthru
        _
      %p721 = scmp.le.s32.totalorder 2, %s16
      // Predicated region
      $region53: #{triplet_attention.1} parent=5 // pred_check
        %p722 = pneg %p721
      $region54: #{triplet_attention.1} parent=5 // pred_check_branch
        %724 = sbr.rel (%p722) target = $region56
      $region55: #{triplet_attention.1} parent=5 // pred_region
        %s725 = ssub.s32 %s16, 2
        // Predicated region
        $region57: #{triplet_attention.1} parent=55 // pred_check
          %p726 = pneg %p197
        $region58: #{triplet_attention.1} parent=55 // pred_check_branch
          %728 = sbr.rel (%p726) target = $region60
        $region59: #{triplet_attention.1} parent=55 // pred_region
          %s729 = sand.u32 %s182, 1
          %s730 = scalar_lea.sflag [#allocation3], %s729
          %s731 = sand.u32 %s182, 1
          %s732 = smul.addr %s731, 8
          %s733 = scalar_lea.vmem [#allocation2], %s732
          %735 = dma.done %s730, 128
        $region60: #{triplet_attention.1} parent=55 // pred_fallthru
          _
      $region56: #{triplet_attention.1} parent=5 // pred_fallthru
        _
    $region6: #{triplet_attention.1} parent=1 // loop_footer
      %s20 = sadd.s32 1, %s16
    $region7: #{triplet_attention.1} parent=1 // loop_footer_branch
      %15 = sbr.rel target = $region3
    $region8: #{triplet_attention.1} parent=1 // loop_exit
      _
    %736 = vsyncpa [#allocation3], 1
    %s737 = scalar_lea.sflag [#allocation3], 1
    %738 = vsyncpa %s737, 1

</llo_original>
